<compile_context>
chip_gen: v7x
topology: tpu7x:2x2x1
jax: 0.10.0
libtpu: 0.0.40
codegen_flags: <defaults>
</compile_context>

<pallas_src>
import functools

import jax
import jax.numpy as jnp
from jax import lax
from jax.experimental import pallas as pl
from jax.experimental.pallas import tpu as pltpu


def _round_up(x, m):
    return ((x + m - 1) // m) * m


def _contrastive_loss_kernel(tab_ref, img_ref, out_ref,
                             m_ref, l_ref, d_ref, neg_ref, *,
                             batch, tq, tn, inv_temp, pos_margin, neg_margin,
                             mm_dtype):
    i = pl.program_id(0)          # tab row tile
    j = pl.program_id(1)          # img col tile (reduction axis, last in grid)
    n_col = pl.num_programs(1)

    @pl.when(j == 0)
    def _():
        m_ref[...] = jnp.full(m_ref.shape, -1e30, jnp.float32)
        l_ref[...] = jnp.zeros(l_ref.shape, jnp.float32)
        d_ref[...] = jnp.zeros(d_ref.shape, jnp.float32)
        neg_ref[...] = jnp.zeros(neg_ref.shape, jnp.float32)

    # F.normalize(p=2, dim=-1, eps=1e-12) == x * rsqrt(max(sum(x^2), eps^2)).
    # Fold 1/temperature into the tab operand -> sim comes out already scaled.
    tab = tab_ref[...].astype(jnp.float32)
    img = img_ref[...].astype(jnp.float32)
    eps2 = jnp.float32(1e-24)
    tab_scale = lax.rsqrt(jnp.maximum(
        jnp.sum(tab * tab, axis=-1, keepdims=True), eps2)) * jnp.float32(inv_temp)
    img_scale = lax.rsqrt(jnp.maximum(
        jnp.sum(img * img, axis=-1, keepdims=True), eps2))
    tab_n = (tab * tab_scale).astype(mm_dtype)
    img_n = (img * img_scale).astype(mm_dtype)

    # (TQ, TN) block of sim = (tab_n / T) @ img_n^T, contracting the feature axis
    # of both operands directly (no transpose before the MXU).
    sim = lax.dot_general(tab_n, img_n,
                          dimension_numbers=(((1,), (1,)), ((), ())),
                          preferred_element_type=jnp.float32)

    # Global row/col indices from two small iotas, broadcast inside comparisons.
    row_ids = i * tq + lax.broadcasted_iota(jnp.int32, (tq, 1), 0)   # (TQ, 1)
    col_ids = j * tn + lax.broadcasted_iota(jnp.int32, (1, tn), 1)   # (1, TN)
    col_valid = col_ids < batch                                      # (1, TN)
    is_diag = row_ids == col_ids                                     # (TQ, TN)

    neg_big = jnp.float32(-1e30)
    sim_m = jnp.where(col_valid, sim, neg_big)

    # Online logsumexp update fused with diag / negative-hinge accumulation.
    m_prev = m_ref[...]
    m_new = jnp.maximum(m_prev, jnp.max(sim_m, axis=-1, keepdims=True))
    alpha = jnp.exp(m_prev - m_new)
    p = jnp.exp(sim_m - m_new)
    l_ref[...] = alpha * l_ref[...] + jnp.sum(p, axis=-1, keepdims=True)
    m_ref[...] = m_new
    d_ref[...] += jnp.sum(jnp.where(is_diag, sim, 0.0), axis=-1, keepdims=True)
    neg_mask = jnp.logical_and(col_valid, jnp.logical_not(is_diag))
    neg_ref[...] += jnp.sum(
        jnp.where(neg_mask, jnp.maximum(sim - jnp.float32(neg_margin), 0.0), 0.0),
        axis=-1, keepdims=True)

    @pl.when(j == n_col - 1)
    def _():
        row_valid = (row_ids < batch).astype(jnp.float32)            # (TQ, 1)
        lse = m_ref[...] + jnp.log(l_ref[...])
        diag = d_ref[...]
        ce_rows = lse - diag                       # cross-entropy, labels = arange(B)
        pos_rows = jnp.maximum(jnp.float32(pos_margin) - diag, 0.0)
        n_pairs = batch * (batch - 1)
        # Matches torch: mean over an empty masked_select is NaN when B == 1.
        inv_pairs = (1.0 / n_pairs) if n_pairs > 0 else float("nan")
        per_row = (ce_rows + pos_rows) * jnp.float32(1.0 / batch)
        per_row = per_row + neg_ref[...] * jnp.float32(inv_pairs)
        out_ref[0, 0] = jnp.sum(per_row * row_valid)


def contrastive_loss(img_emb, tab_emb, temperature=0.1,
                     pos_margin=0.0, neg_margin=1.0):
    """Pallas TPU implementation of ContrastiveLoss.forward (scalar loss)."""
    assert img_emb.shape == tab_emb.shape and img_emb.ndim == 2
    B, D = img_emb.shape

    # 128 is the MXU granule on v5e/v6e/v7x and keeps double-buffered (tile, D)
    # operands a few MB for realistic D; tiny batches use a single 8-aligned tile.
    if B <= 128:
        tq = tn = _round_up(max(B, 1), 8)
    else:
        tq = tn = 128
    b_pad = _round_up(B, tq)

    if b_pad != B:
        pad = ((0, b_pad - B), (0, 0))
        img_p = jnp.pad(img_emb, pad)
        tab_p = jnp.pad(tab_emb, pad)
    else:
        img_p, tab_p = img_emb, tab_emb

    n_row = b_pad // tq
    n_col = b_pad // tn

    # bf16 inputs -> bf16 MXU operands (f32 accumulation); otherwise keep f32.
    mm_dtype = jnp.bfloat16 if img_emb.dtype == jnp.bfloat16 else jnp.float32

    kernel = functools.partial(
        _contrastive_loss_kernel,
        batch=B, tq=tq, tn=tn,
        inv_temp=1.0 / temperature,
        pos_margin=pos_margin, neg_margin=neg_margin,
        mm_dtype=mm_dtype)

    partials = pl.pallas_call(
        kernel,
        out_shape=jax.ShapeDtypeStruct((n_row, 1), jnp.float32),
        grid_spec=pltpu.PrefetchScalarGridSpec(
            num_scalar_prefetch=0,
            grid=(n_row, n_col),
            in_specs=[
                pl.BlockSpec((tq, D), lambda i, j: (i, 0)),   # tab rows (sim rows)
                pl.BlockSpec((tn, D), lambda i, j: (j, 0)),   # img rows (sim cols)
            ],
            out_specs=pl.BlockSpec((1, 1), lambda i, j: (i, 0),
                                   memory_space=pltpu.MemorySpace.SMEM),
            scratch_shapes=[
                pltpu.VMEM((tq, 1), jnp.float32),   # running row max
                pltpu.VMEM((tq, 1), jnp.float32),   # running sum of exp
                pltpu.VMEM((tq, 1), jnp.float32),   # diag (positive) similarities
                pltpu.VMEM((tq, 1), jnp.float32),   # per-row negative-hinge sums
            ],
        ),
        compiler_params=pltpu.CompilerParams(
            dimension_semantics=("parallel", "arbitrary"),
            vmem_limit_bytes=32 * 1024 * 1024,
        ),
    )(tab_p, img_p)

    return jnp.sum(partials)


def _reference_loss(img_emb, tab_emb, temperature=0.1,
                    pos_margin=0.0, neg_margin=1.0):
    # Pure-JAX reference mirroring the PyTorch module, for correctness check.
    eps = 1e-12
    img_n = img_emb / jnp.maximum(
        jnp.linalg.norm(img_emb, axis=-1, keepdims=True), eps)
    tab_n = tab_emb / jnp.maximum(
        jnp.linalg.norm(tab_emb, axis=-1, keepdims=True), eps)
    sim = (tab_n @ img_n.T) / temperature
    B = sim.shape[0]
    lse = jax.scipy.special.logsumexp(sim, axis=-1)
    diag = jnp.diag(sim)
    loss = jnp.mean(lse - diag)
    loss += jnp.mean(jnp.maximum(pos_margin - diag, 0.0))
    mask = ~jnp.eye(B, dtype=bool)
    loss += jnp.sum(jnp.where(mask, jnp.maximum(sim - neg_margin, 0.0), 0.0)) / (B * (B - 1))
    return loss


if __name__ == "__main__":
    key = jax.random.PRNGKey(0)

    # Case 1: small single-tile shape (matches the module's toy usage).
    k_img, k_tab = jax.random.split(key)
    B, D = 8, 32
    img_emb = jax.random.normal(k_img, (B, D), dtype=jnp.float32)
    tab_emb = jax.random.normal(k_tab, (B, D), dtype=jnp.float32)
    loss = jax.block_until_ready(contrastive_loss(img_emb, tab_emb))
    ref = _reference_loss(img_emb, tab_emb)
    assert jnp.allclose(loss, ref, atol=1e-4, rtol=1e-4), (loss, ref)

    # Case 2: exercises the tiled / padded / masked multi-tile path (grid 2x2).
    k_img2, k_tab2 = jax.random.split(jax.random.PRNGKey(0), 2)
    B2, D2 = 130, 32
    img2 = jax.random.normal(k_img2, (B2, D2), dtype=jnp.float32)
    tab2 = jax.random.normal(k_tab2, (B2, D2), dtype=jnp.float32)
    loss2 = jax.block_until_ready(contrastive_loss(img2, tab2))
    ref2 = _reference_loss(img2, tab2)
    assert jnp.allclose(loss2, ref2, atol=1e-3, rtol=1e-3), (loss2, ref2)

    print("KERNEL_OK")
</pallas_src>

<mosaic_0001>
module attributes {stable_mosaic.version = 11 : i64} {
  func.func @_contrastive_loss_kernel(%arg0: i32, %arg1: i32, %arg2: memref<8x32xf32, #tpu.memory_space<vmem>>, %arg3: memref<8x32xf32, #tpu.memory_space<vmem>>, %arg4: memref<1x1xf32, #tpu.memory_space<smem>>, %arg5: memref<8x1xf32, #tpu.memory_space<vmem>>, %arg6: memref<8x1xf32, #tpu.memory_space<vmem>>, %arg7: memref<8x1xf32, #tpu.memory_space<vmem>>, %arg8: memref<8x1xf32, #tpu.memory_space<vmem>>) attributes {dimension_semantics = [#tpu.dimension_semantics<parallel>, #tpu.dimension_semantics<arbitrary>], iteration_bounds = array<i64: 1, 1>, scalar_prefetch = 0 : i64, scratch_operands = 4 : i64, tpu.core_type = #tpu.core_type<tc>, window_params = [{transform_indices = @transform_0, window_bounds = array<i64: 8, 32>}, {transform_indices = @transform_1, window_bounds = array<i64: 8, 32>}, {transform_indices = @transform_2, window_bounds = array<i64: 1, 1>}]} {
    %c0_i32 = arith.constant 0 : i32
    %0 = arith.cmpi eq, %arg1, %c0_i32 : i32
    %1 = arith.extui %0 : i1 to i32
    %c0_i32_0 = arith.constant 0 : i32
    %2 = arith.cmpi ne, %1, %c0_i32_0 : i32
    scf.if %2 {
      %cst_39 = arith.constant -1.000000e+30 : f32
      %81 = vector.broadcast %cst_39 : f32 to vector<8x1xf32>
      %c0_40 = arith.constant 0 : index
      %c0_41 = arith.constant 0 : index
      %82 = vector.load %arg5[%c0_40, %c0_41] : memref<8x1xf32, #tpu.memory_space<vmem>>, vector<8x1xf32>
      tpu.vector_store %arg5[%c0_40, %c0_41], %81 {strides = array<i32>} : memref<8x1xf32, #tpu.memory_space<vmem>>, vector<8x1xf32>,
      %cst_42 = arith.constant 0.000000e+00 : f32
      %83 = vector.broadcast %cst_42 : f32 to vector<8x1xf32>
      %c0_43 = arith.constant 0 : index
      %c0_44 = arith.constant 0 : index
      %84 = vector.load %arg6[%c0_43, %c0_44] : memref<8x1xf32, #tpu.memory_space<vmem>>, vector<8x1xf32>
      tpu.vector_store %arg6[%c0_43, %c0_44], %83 {strides = array<i32>} : memref<8x1xf32, #tpu.memory_space<vmem>>, vector<8x1xf32>,
      %cst_45 = arith.constant 0.000000e+00 : f32
      %85 = vector.broadcast %cst_45 : f32 to vector<8x1xf32>
      %c0_46 = arith.constant 0 : index
      %c0_47 = arith.constant 0 : index
      %86 = vector.load %arg7[%c0_46, %c0_47] : memref<8x1xf32, #tpu.memory_space<vmem>>, vector<8x1xf32>
      tpu.vector_store %arg7[%c0_46, %c0_47], %85 {strides = array<i32>} : memref<8x1xf32, #tpu.memory_space<vmem>>, vector<8x1xf32>,
      %cst_48 = arith.constant 0.000000e+00 : f32
      %87 = vector.broadcast %cst_48 : f32 to vector<8x1xf32>
      %c0_49 = arith.constant 0 : index
      %c0_50 = arith.constant 0 : index
      %88 = vector.load %arg8[%c0_49, %c0_50] : memref<8x1xf32, #tpu.memory_space<vmem>>, vector<8x1xf32>
      tpu.vector_store %arg8[%c0_49, %c0_50], %87 {strides = array<i32>} : memref<8x1xf32, #tpu.memory_space<vmem>>, vector<8x1xf32>,
    } else {
    }
    %c0 = arith.constant 0 : index
    %c0_1 = arith.constant 0 : index
    %3 = vector.load %arg2[%c0, %c0_1] : memref<8x32xf32, #tpu.memory_space<vmem>>, vector<8x32xf32>
    %c0_2 = arith.constant 0 : index
    %c0_3 = arith.constant 0 : index
    %4 = vector.load %arg3[%c0_2, %c0_3] : memref<8x32xf32, #tpu.memory_space<vmem>>, vector<8x32xf32>
    %5 = arith.mulf %3, %3 : vector<8x32xf32>
    %cst = arith.constant dense<0.000000e+00> : vector<8xf32>
    %6 = vector.multi_reduction <add>, %5, %cst [1] : vector<8x32xf32> to vector<8xf32>
    %7 = vector.shape_cast %6 : vector<8xf32> to vector<8x1xf32>
    %cst_4 = arith.constant 1.000000e-24 : f32
    %8 = vector.broadcast %cst_4 : f32 to vector<8x1xf32>
    %9 = arith.maximumf %7, %8 : vector<8x1xf32>
    %10 = math.rsqrt %9 : vector<8x1xf32>
    %cst_5 = arith.constant 1.000000e+01 : f32
    %11 = vector.broadcast %cst_5 : f32 to vector<8x1xf32>
    %12 = arith.mulf %10, %11 : vector<8x1xf32>
    %13 = arith.mulf %4, %4 : vector<8x32xf32>
    %cst_6 = arith.constant dense<0.000000e+00> : vector<8xf32>
    %14 = vector.multi_reduction <add>, %13, %cst_6 [1] : vector<8x32xf32> to vector<8xf32>
    %15 = vector.shape_cast %14 : vector<8xf32> to vector<8x1xf32>
    %cst_7 = arith.constant 1.000000e-24 : f32
    %16 = vector.broadcast %cst_7 : f32 to vector<8x1xf32>
    %17 = arith.maximumf %15, %16 : vector<8x1xf32>
    %18 = math.rsqrt %17 : vector<8x1xf32>
    %19 = vector.broadcast %12 : vector<8x1xf32> to vector<8x32xf32>
    %20 = arith.mulf %3, %19 : vector<8x32xf32>
    %21 = vector.broadcast %18 : vector<8x1xf32> to vector<8x32xf32>
    %22 = arith.mulf %4, %21 : vector<8x32xf32>
    %cst_8 = arith.constant dense<0.000000e+00> : vector<8x8xf32>
    %23 = tpu.matmul %20, %22, %cst_8 {dimension_numbers = #tpu.dot_dimension_numbers<[1], [1], [0], [0], [0, 0, 1, 0], [], []>} : vector<8x32xf32>, vector<8x32xf32>, vector<8x8xf32> -> vector<8x8xf32>
    %c8_i32 = arith.constant 8 : i32
    %24 = arith.muli %arg0, %c8_i32 : i32
    %25 = tpu.iota {dimensions = array<i32: 0>} : vector<8x1xi32>
    %26 = vector.broadcast %24 : i32 to vector<8x1xi32>
    %27 = arith.addi %26, %25 : vector<8x1xi32>
    %c8_i32_9 = arith.constant 8 : i32
    %28 = arith.muli %arg1, %c8_i32_9 : i32
    %29 = tpu.iota {dimensions = array<i32: 1>} : vector<1x8xi32>
    %30 = vector.broadcast %28 : i32 to vector<1x8xi32>
    %31 = arith.addi %30, %29 : vector<1x8xi32>
    %c8_i32_10 = arith.constant 8 : i32
    %32 = vector.broadcast %c8_i32_10 : i32 to vector<1x8xi32>
    %33 = arith.cmpi slt, %31, %32 : vector<1x8xi32>
    %34 = vector.broadcast %27 : vector<8x1xi32> to vector<8x8xi32>
    %35 = vector.broadcast %31 : vector<1x8xi32> to vector<8x8xi32>
    %36 = arith.cmpi eq, %34, %35 : vector<8x8xi32>
    %cst_11 = arith.constant -1.000000e+30 : f32
    %37 = vector.shape_cast %33 : vector<1x8xi1> to vector<1x8xi1>
    %38 = vector.broadcast %37 : vector<1x8xi1> to vector<8x8xi1>
    %39 = vector.broadcast %cst_11 : f32 to vector<8x8xf32>
    %40 = arith.select %38, %23, %39 : vector<8x8xi1>, vector<8x8xf32>
    %c0_12 = arith.constant 0 : index
    %c0_13 = arith.constant 0 : index
    %41 = vector.load %arg5[%c0_12, %c0_13] : memref<8x1xf32, #tpu.memory_space<vmem>>, vector<8x1xf32>
    %cst_14 = arith.constant dense<0xFF800000> : vector<8xf32>
    %42 = vector.multi_reduction <maximumf>, %40, %cst_14 [1] : vector<8x8xf32> to vector<8xf32>
    %43 = vector.shape_cast %42 : vector<8xf32> to vector<8x1xf32>
    %44 = arith.maximumf %41, %43 : vector<8x1xf32>
    %45 = arith.subf %41, %44 : vector<8x1xf32>
    %46 = math.exp %45 : vector<8x1xf32>
    %47 = vector.broadcast %44 : vector<8x1xf32> to vector<8x8xf32>
    %48 = arith.subf %40, %47 : vector<8x8xf32>
    %49 = math.exp %48 : vector<8x8xf32>
    %c0_15 = arith.constant 0 : index
    %c0_16 = arith.constant 0 : index
    %50 = vector.load %arg6[%c0_15, %c0_16] : memref<8x1xf32, #tpu.memory_space<vmem>>, vector<8x1xf32>
    %51 = arith.mulf %46, %50 : vector<8x1xf32>
    %cst_17 = arith.constant dense<0.000000e+00> : vector<8xf32>
    %52 = vector.multi_reduction <add>, %49, %cst_17 [1] : vector<8x8xf32> to vector<8xf32>
    %53 = vector.shape_cast %52 : vector<8xf32> to vector<8x1xf32>
    %54 = arith.addf %51, %53 : vector<8x1xf32>
    %c0_18 = arith.constant 0 : index
    %c0_19 = arith.constant 0 : index
    %55 = vector.load %arg6[%c0_18, %c0_19] : memref<8x1xf32, #tpu.memory_space<vmem>>, vector<8x1xf32>
    tpu.vector_store %arg6[%c0_18, %c0_19], %54 {strides = array<i32>} : memref<8x1xf32, #tpu.memory_space<vmem>>, vector<8x1xf32>,
    %c0_20 = arith.constant 0 : index
    %c0_21 = arith.constant 0 : index
    %56 = vector.load %arg5[%c0_20, %c0_21] : memref<8x1xf32, #tpu.memory_space<vmem>>, vector<8x1xf32>
    tpu.vector_store %arg5[%c0_20, %c0_21], %44 {strides = array<i32>} : memref<8x1xf32, #tpu.memory_space<vmem>>, vector<8x1xf32>,
    %c0_22 = arith.constant 0 : index
    %c0_23 = arith.constant 0 : index
    %57 = vector.load %arg7[%c0_22, %c0_23] : memref<8x1xf32, #tpu.memory_space<vmem>>, vector<8x1xf32>
    %cst_24 = arith.constant 0.000000e+00 : f32
    %58 = vector.broadcast %cst_24 : f32 to vector<8x8xf32>
    %59 = arith.select %36, %23, %58 : vector<8x8xi1>, vector<8x8xf32>
    %cst_25 = arith.constant dense<0.000000e+00> : vector<8xf32>
    %60 = vector.multi_reduction <add>, %59, %cst_25 [1] : vector<8x8xf32> to vector<8xf32>
    %61 = vector.shape_cast %60 : vector<8xf32> to vector<8x1xf32>
    %62 = arith.addf %57, %61 : vector<8x1xf32>
    %c0_26 = arith.constant 0 : index
    %c0_27 = arith.constant 0 : index
    %63 = vector.load %arg7[%c0_26, %c0_27] : memref<8x1xf32, #tpu.memory_space<vmem>>, vector<8x1xf32>
    tpu.vector_store %arg7[%c0_26, %c0_27], %62 {strides = array<i32>} : memref<8x1xf32, #tpu.memory_space<vmem>>, vector<8x1xf32>,
    %cst_28 = arith.constant dense<true> : vector<8x8xi1>
    %64 = arith.xori %36, %cst_28 : vector<8x8xi1>
    %65 = vector.broadcast %33 : vector<1x8xi1> to vector<8x8xi1>
    %66 = arith.andi %65, %64 : vector<8x8xi1>
    %c0_29 = arith.constant 0 : index
    %c0_30 = arith.constant 0 : index
    %67 = vector.load %arg8[%c0_29, %c0_30] : memref<8x1xf32, #tpu.memory_space<vmem>>, vector<8x1xf32>
    %cst_31 = arith.constant 1.000000e+00 : f32
    %68 = vector.broadcast %cst_31 : f32 to vector<8x8xf32>
    %69 = arith.subf %23, %68 : vector<8x8xf32>
    %cst_32 = arith.constant 0.000000e+00 : f32
    %70 = vector.broadcast %cst_32 : f32 to vector<8x8xf32>
    %71 = arith.maximumf %69, %70 : vector<8x8xf32>
    %cst_33 = arith.constant 0.000000e+00 : f32
    %72 = vector.broadcast %cst_33 : f32 to vector<8x8xf32>
    %73 = arith.select %66, %71, %72 : vector<8x8xi1>, vector<8x8xf32>
    %cst_34 = arith.constant dense<0.000000e+00> : vector<8xf32>
    %74 = vector.multi_reduction <add>, %73, %cst_34 [1] : vector<8x8xf32> to vector<8xf32>
    %75 = vector.shape_cast %74 : vector<8xf32> to vector<8x1xf32>
    %76 = arith.addf %67, %75 : vector<8x1xf32>
    %c0_35 = arith.constant 0 : index
    %c0_36 = arith.constant 0 : index
    %77 = vector.load %arg8[%c0_35, %c0_36] : memref<8x1xf32, #tpu.memory_space<vmem>>, vector<8x1xf32>
    tpu.vector_store %arg8[%c0_35, %c0_36], %76 {strides = array<i32>} : memref<8x1xf32, #tpu.memory_space<vmem>>, vector<8x1xf32>,
    %c0_i32_37 = arith.constant 0 : i32
    %78 = arith.cmpi eq, %arg1, %c0_i32_37 : i32
    %79 = arith.extui %78 : i1 to i32
    %c0_i32_38 = arith.constant 0 : i32
    %80 = arith.cmpi ne, %79, %c0_i32_38 : i32
    scf.if %80 {
      %c8_i32_39 = arith.constant 8 : i32
      %81 = vector.broadcast %c8_i32_39 : i32 to vector<8x1xi32>
      %82 = arith.cmpi slt, %27, %81 : vector<8x1xi32>
      %83 = arith.extui %82 : vector<8x1xi1> to vector<8x1xi32>
      %84 = arith.sitofp %83 : vector<8x1xi32> to vector<8x1xf32>
      %c0_40 = arith.constant 0 : index
      %c0_41 = arith.constant 0 : index
      %85 = vector.load %arg5[%c0_40, %c0_41] : memref<8x1xf32, #tpu.memory_space<vmem>>, vector<8x1xf32>
      %c0_42 = arith.constant 0 : index
      %c0_43 = arith.constant 0 : index
      %86 = vector.load %arg6[%c0_42, %c0_43] : memref<8x1xf32, #tpu.memory_space<vmem>>, vector<8x1xf32>
      %87 = math.log %86 : vector<8x1xf32>
      %88 = arith.addf %85, %87 : vector<8x1xf32>
      %c0_44 = arith.constant 0 : index
      %c0_45 = arith.constant 0 : index
      %89 = vector.load %arg7[%c0_44, %c0_45] : memref<8x1xf32, #tpu.memory_space<vmem>>, vector<8x1xf32>
      %90 = arith.subf %88, %89 : vector<8x1xf32>
      %cst_46 = arith.constant 0.000000e+00 : f32
      %91 = vector.broadcast %cst_46 : f32 to vector<8x1xf32>
      %92 = arith.subf %91, %89 : vector<8x1xf32>
      %cst_47 = arith.constant 0.000000e+00 : f32
      %93 = vector.broadcast %cst_47 : f32 to vector<8x1xf32>
      %94 = arith.maximumf %92, %93 : vector<8x1xf32>
      %95 = arith.addf %90, %94 : vector<8x1xf32>
      %cst_48 = arith.constant 1.250000e-01 : f32
      %96 = vector.broadcast %cst_48 : f32 to vector<8x1xf32>
      %97 = arith.mulf %95, %96 : vector<8x1xf32>
      %c0_49 = arith.constant 0 : index
      %c0_50 = arith.constant 0 : index
      %98 = vector.load %arg8[%c0_49, %c0_50] : memref<8x1xf32, #tpu.memory_space<vmem>>, vector<8x1xf32>
      %cst_51 = arith.constant 0.0178571437 : f32
      %99 = vector.broadcast %cst_51 : f32 to vector<8x1xf32>
      %100 = arith.mulf %98, %99 : vector<8x1xf32>
      %101 = arith.addf %97, %100 : vector<8x1xf32>
      %102 = arith.mulf %101, %84 : vector<8x1xf32>
      %103 = vector.shape_cast %102 : vector<8x1xf32> to vector<1x8x1xf32>
      %cst_52 = arith.constant dense<0.000000e+00> : vector<1xf32>
      %104 = vector.multi_reduction <add>, %103, %cst_52 [1, 2] : vector<1x8x1xf32> to vector<1xf32>
      %105 = vector.shape_cast %104 : vector<1xf32> to vector<1x1x1xf32>
      %106 = vector.extract %105[0, 0, 0] : f32 from vector<1x1x1xf32>
      %c0_53 = arith.constant 0 : index
      %c0_54 = arith.constant 0 : index
      %107 = memref.load %arg4[%c0_53, %c0_54] : memref<1x1xf32, #tpu.memory_space<smem>>
      memref.store %106, %arg4[%c0_53, %c0_54] : memref<1x1xf32, #tpu.memory_space<smem>>
    } else {
    }
    return
  }
  func.func @transform_0(%arg0: i32, %arg1: i32) -> (i32, i32) {
    %c0_i32 = arith.constant 0 : i32
    %c0_i32_0 = arith.constant 0 : i32
    return %arg0, %c0_i32 : i32, i32
  }
  func.func @transform_1(%arg0: i32, %arg1: i32) -> (i32, i32) {
    %c0_i32 = arith.constant 0 : i32
    %c0_i32_0 = arith.constant 0 : i32
    return %arg1, %c0_i32 : i32, i32
  }
  func.func @transform_2(%arg0: i32, %arg1: i32) -> (i32, i32) {
    %c0_i32 = arith.constant 0 : i32
    %c0_i32_0 = arith.constant 0 : i32
    return %arg0, %c0_i32 : i32, i32
  }
}

</mosaic_0001>

<llo_original>
// kernel: tpu_custom_call.1
$region0: #{tpu_custom_call.1}
  #allocation0 [shape = 'u32[]', space=smem, size = 0x4, offset = 0x4, fixed_abs, tag = 'smem constant byte address 0x4 - core index']
  #allocation1 [shape = 'u32[144,128]{1,0:T(1,128)}', space=vmem, size = 0x12000, scoped, tag = 'internal scratch']
  #allocation2 [shape = 'f32[8,1]{1,0:T(8,128)}', space=vmem, size = 0x1000, scoped, tag = 'scratch operand']
  #allocation3 [shape = 'f32[8,1]{1,0:T(8,128)}', space=vmem, size = 0x1000, scoped, tag = 'scratch operand']
  #allocation4 [shape = 'f32[8,1]{1,0:T(8,128)}', space=vmem, size = 0x1000, scoped, tag = 'scratch operand']
  #allocation5 [shape = 'f32[8,1]{1,0:T(8,128)}', space=vmem, size = 0x1000, scoped, tag = 'scratch operand']
  %s0 = inlined_call_operand.hbm [shape: f32[8,32], index: 0, kind: input, shape index: {}]
  %s1 = inlined_call_operand.hbm [shape: f32[8,32], index: 1, kind: input, shape index: {}]
  %s2 = inlined_call_operand.hbm [shape: f32[1,1], index: 2, kind: output, shape index: {}]
  %s3 = sld [smem:[#allocation0]]
  $region34: #{tpu_custom_call.1} parent=0
    _
  %s5 = ssub.s32 1, %s3
  %s6 = scalar_select 0, %s5, %s3
  $region1: #{tpu_custom_call.1} parent=0
    #allocation6 [shape = 'u8[4096]{0}', space=vmem, size = 0x1000, scoped, tag = 'input window, operand 0, single buffered']
    #allocation7 [shape = 's32[1]{0}', space=sflag, size = 0x4, scoped, tag = 'scoped memory for tpu_custom_call.1']
    #allocation8 [shape = 's32[1]{0}', space=sflag, size = 0x4, scoped, tag = 'scoped memory for tpu_custom_call.1']
    #allocation9 [shape = 'u8[4096]{0}', space=vmem, size = 0x1000, scoped, tag = 'input window, operand 1, single buffered']
    #allocation10 [shape = 's32[1]{0}', space=sflag, size = 0x4, scoped, tag = 'scoped memory for tpu_custom_call.1']
    #allocation11 [shape = 'u8[512]{0}', space=smem, size = 0x200, scoped, tag = 'output window, operand 0, single buffered']
    %7 = vsyncpa [#allocation7], 0
    %8 = vsyncpa [#allocation10], 0
    %9 = vsyncpa [#allocation8], 0
    // Predicated region
    $region2: #{tpu_custom_call.1} parent=1 // pred_check
      _
    $region3: #{tpu_custom_call.1} parent=1 // pred_check_branch
      %11 = sbr.rel (0) target = $region5
    $region4: #{tpu_custom_call.1} parent=1 // pred_region
      %s13 = ssub.s32 128, 128
      %14 = vsyncadd [#allocation7], %s13
      %s16 = sshll.u32 [#allocation6], 4
      %s17 = int_to_ptr.vmem [resolvable:$true] %s16
      %19 = dma.hbm_to_vmem [thread:$0]  %s0, 128, %s17, [#allocation7]
    $region5: #{tpu_custom_call.1} parent=1 // pred_fallthru
      _
    // Predicated region
    $region6: #{tpu_custom_call.1} parent=1 // pred_check
      _
    $region7: #{tpu_custom_call.1} parent=1 // pred_check_branch
      %21 = sbr.rel (0) target = $region9
    $region8: #{tpu_custom_call.1} parent=1 // pred_region
      %s23 = ssub.s32 128, 128
      %24 = vsyncadd [#allocation10], %s23
      %s26 = sshll.u32 [#allocation9], 4
      %s27 = int_to_ptr.vmem [resolvable:$true] %s26
      %29 = dma.hbm_to_vmem [thread:$0]  %s1, 128, %s27, [#allocation10]
    $region9: #{tpu_custom_call.1} parent=1 // pred_fallthru
      _
    // Predicated region
    $region10: #{tpu_custom_call.1} parent=1 // pred_check
      _
    $region11: #{tpu_custom_call.1} parent=1 // pred_check_branch
      %31 = sbr.rel (0) target = $region13
    $region12: #{tpu_custom_call.1} parent=1 // pred_region
      %32 = dma.done [#allocation7], 128
    $region13: #{tpu_custom_call.1} parent=1 // pred_fallthru
      _
    // Predicated region
    $region14: #{tpu_custom_call.1} parent=1 // pred_check
      _
    $region15: #{tpu_custom_call.1} parent=1 // pred_check_branch
      %34 = sbr.rel (0) target = $region17
    $region16: #{tpu_custom_call.1} parent=1 // pred_region
      %35 = dma.done [#allocation10], 128
    $region17: #{tpu_custom_call.1} parent=1 // pred_fallthru
      _
    %p36 = scmp.eq.s32.totalorder 0, 0
    // Predicated region
    $region18: #{tpu_custom_call.1} parent=1 // pred_check
      %p37 = pneg %p36
    $region19: #{tpu_custom_call.1} parent=1 // pred_check_branch
      %39 = sbr.rel (%p37) target = $region21
    $region20: #{tpu_custom_call.1} parent=1 // pred_region
      %vm40 = vcmask 7168
      %41 = vst.msk [vmem:[#allocation2] sm:$0xff] %vm40, -1e+30
      %42 = vst.msk [vmem:[#allocation3] sm:$0xff] %vm40, 0.0
      %43 = vst.msk [vmem:[#allocation4] sm:$0xff] %vm40, 0.0
      %44 = vst.msk [vmem:[#allocation5] sm:$0xff] %vm40, 0.0
    $region21: #{tpu_custom_call.1} parent=1 // pred_fallthru
      _
    %v45 = vld [vmem:[#allocation6] sm:$0xff]
    %v46 = vld [vmem:[#allocation9] sm:$0xff]
    %v47 = vmul.f32 %v45, %v45
    %vm48 = vcmask 261120
    %v49 = vsel %vm48, %v47, 0.0
    %50 = vadd.xlane.f32.xlu0 %v49
    %v51 = vpop.xlane.xlu0 %50
    %v52 = vmax.f32 %v51, 1e-24
    %v53 = vrsqrt.pop %v52
    %v54 = vmul.f32 %v53, 10.0
    %v55 = vmul.f32 %v46, %v46
    %v56 = vsel %vm48, %v55, 0.0
    %57 = vadd.xlane.f32.xlu0 %v56
    %v58 = vpop.xlane.xlu0 %57
    %v59 = vmax.f32 %v58, 1e-24
    %v60 = vrsqrt.pop %v59
    %v61 = vmul.f32 %v45, %v54
    %v62 = vmul.f32 %v46, %v60
    %v64 = vsel %vm48, %v61, 0
    %v67 = vsel %vm48, %v62, 0
    %69 = vmatprep.subr.mxu0 0.0
    %70 = vmatpush1.xpose.msra.mxu0 %v67
    %71 = vmatprep.subr.mxu0 0.0
    %72 = vmatpush1.xpose.msra.mxu0 0.0
    %73 = vmatprep.subr.mxu0 0.0
    %74 = vmatpush1.xpose.msra.mxu0 0.0
    %75 = vmatprep.subr.mxu0 0.0
    %76 = vmatpush1.xpose.msra.mxu0 0.0
    %77 = vmatprep.subr.mxu0 0.0
    %78 = vmatpush1.xpose.msra.mxu0 0.0
    %79 = vmatprep.subr.mxu0 0.0
    %80 = vmatpush1.xpose.msra.mxu0 0.0
    %81 = vmatprep.subr.mxu0 0.0
    %82 = vmatpush1.xpose.msra.mxu0 0.0
    %83 = vmatprep.subr.mxu0 0.0
    %84 = vmatpush1.xpose.msra.mxu0 0.0
    %85 = vmatprep.subr.mxu0 0.0
    %86 = vmatpush1.xpose.msra.mxu0 0.0
    %87 = vmatprep.subr.mxu0 0.0
    %88 = vmatpush1.xpose.msra.mxu0 0.0
    %89 = vmatprep.subr.mxu0 0.0
    %90 = vmatpush1.xpose.msra.mxu0 0.0
    %91 = vmatprep.subr.mxu0 0.0
    %92 = vmatpush1.xpose.msra.mxu0 0.0
    %93 = vmatprep.subr.mxu0 0.0
    %94 = vmatpush1.xpose.msra.mxu0 0.0
    %95 = vmatprep.subr.mxu0 0.0
    %96 = vmatpush1.xpose.msra.mxu0 0.0
    %97 = vmatprep.subr.mxu0 0.0
    %98 = vmatpush1.xpose.msra.mxu0 0.0
    %99 = vmatprep.subr.mxu0 0.0
    %100 = vmatpush1.xpose.msra.mxu0 0.0
    %101 = vmatprep.subr.mxu0 0.0
    %102 = vmatpush1.xpose.msra.mxu0 0.0
    %103 = vmatprep.subr.mxu0 0.0
    %104 = vmatpush1.xpose.msra.mxu0 0.0
    %105 = vmatprep.subr.mxu0 0.0
    %106 = vmatpush1.xpose.msra.mxu0 0.0
    %107 = vmatprep.subr.mxu0 0.0
    %108 = vmatpush1.xpose.msra.mxu0 0.0
    %109 = vmatprep.subr.mxu0 0.0
    %110 = vmatpush1.xpose.msra.mxu0 0.0
    %111 = vmatprep.subr.mxu0 0.0
    %112 = vmatpush1.xpose.msra.mxu0 0.0
    %113 = vmatprep.subr.mxu0 0.0
    %114 = vmatpush1.xpose.msra.mxu0 0.0
    %115 = vmatprep.subr.mxu0 0.0
    %116 = vmatpush1.xpose.msra.mxu0 0.0
    %117 = vmatprep.subr.mxu0 0.0
    %118 = vmatpush1.xpose.msra.mxu0 0.0
    %119 = vmatprep.subr.mxu0 0.0
    %120 = vmatpush1.xpose.msra.mxu0 0.0
    %121 = vmatprep.subr.mxu0 0.0
    %122 = vmatpush1.xpose.msra.mxu0 0.0
    %123 = vmatprep.subr.mxu0 0.0
    %124 = vmatpush1.xpose.msra.mxu0 0.0
    %125 = vmatprep.subr.mxu0 0.0
    %126 = vmatpush1.xpose.msra.mxu0 0.0
    %127 = vmatprep.subr.mxu0 0.0
    %128 = vmatpush1.xpose.msra.mxu0 0.0
    %129 = vmatprep.subr.mxu0 0.0
    %130 = vmatpush1.xpose.msra.mxu0 0.0
    %131 = vmatprep.subr.mxu0 0.0
    %132 = vmatpush1.xpose.msra.mxu0 0.0
    %133 = vmatprep.mubr.f32.mxu0 0.0
    %134 = vmatmul.mubr.f32.gmra.mrb[0].mxu0 %v64
    %v135 = vpop.f32.mrb[0].mxu0
    %v136 = vadd.f32 0.0, %v135
    %v137 = vpop.f32.mrb[0].mxu0
    %138 = vdwg.mxu0
    %s139 = smul.u32 0, 8
    %v140 = vlaneseq
    %v141 = vshrl.u32 %v140, 7
    %v142 = vstv %s139
    %v143 = vadd.s32 %v142, %v141
    %s144 = smul.u32 0, 8
    %v145 = vlaneseq
    %v146 = vand.u32 %v145, 127
    %v147 = vstv %s144
    %v148 = vadd.s32 %v147, %v146
    %vm149 = vcmp.lt.s32.totalorder %v148, 8
    %vm150 = vcmp.eq.s32.totalorder %v143, %v148
    %v151 = vsel %vm149, 1, 0
    %vm152 = vcmp.eq.s32.totalorder %v151, 1
    %v153 = vsel %vm152, %v136, -1e+30
    %v154 = vld [vmem:[#allocation2] sm:$0xff]
    %vm155 = vcmask 64512
    %v156 = vsel %vm155, %v153, -inf
    %157 = vmax.xlane.f32.xlu0 %v156
    %v158 = vpop.xlane.xlu0 %157
    %v159 = vmax.f32 %v154, %v158
    %v160 = vsub.f32 %v154, %v159
    %v161 = vmul.f32 %v160, 1.442695
    %v162 = vpow.pop %v161
    %164 = vset.pattern.permute.xlu0 0
    %165 = vperm.xlu0 %164, %v159
    %v166 = vpop.permute.xlu0 %165
    %v168 = vsub.f32 %v153, %v166
    %v169 = vmul.f32 %v168, 1.442695
    %v170 = vpow.pop %v169
    %v171 = vld [vmem:[#allocation3] sm:$0xff]
    %v172 = vmul.f32 %v162, %v171
    %v173 = vsel %vm155, %v170, 0.0
    %174 = vadd.xlane.f32.xlu0 %v173
    %v175 = vpop.xlane.xlu0 %174
    %v176 = vadd.f32 %v172, %v175
    %vm177 = vcmask 7168
    %178 = vst.msk [vmem:[#allocation3] sm:$0xff] %vm177, %v176
    %179 = vst.msk [vmem:[#allocation2] sm:$0xff] %vm177, %v159
    %v180 = vld [vmem:[#allocation4] sm:$0xff]
    %v181 = vsel %vm150, %v136, 0.0
    %v182 = vsel %vm155, %v181, 0.0
    %183 = vadd.xlane.f32.xlu0 %v182
    %v184 = vpop.xlane.xlu0 %183
    %v185 = vadd.f32 %v180, %v184
    %186 = vst.msk [vmem:[#allocation4] sm:$0xff] %vm177, %v185
    %vm187 = vmxor %vm150, 1
    %vm188 = vmand %vm152, %vm187
    %v189 = vld [vmem:[#allocation5] sm:$0xff]
    %v190 = vsub.f32 %v136, 1.0
    %v191 = vmax.f32 %v190, 0.0
    %v192 = vsel %vm188, %v191, 0.0
    %v193 = vsel %vm155, %v192, 0.0
    %194 = vadd.xlane.f32.xlu0 %v193
    %v195 = vpop.xlane.xlu0 %194
    %v196 = vadd.f32 %v189, %v195
    %197 = vst.msk [vmem:[#allocation5] sm:$0xff] %vm177, %v196
    // Predicated region
    $region22: #{tpu_custom_call.1} parent=1 // pred_check
      %p198 = pneg %p36
    $region23: #{tpu_custom_call.1} parent=1 // pred_check_branch
      %200 = sbr.rel (%p198) target = $region25
    $region24: #{tpu_custom_call.1} parent=1 // pred_region
      %vm201 = vcmp.lt.s32.totalorder %v143, 8
      %v202 = vsel %vm201, 1, 0
      %v203 = vcvt.s32.f32 %v202
      %v204 = vld [vmem:[#allocation2] sm:$0xff]
      %v205 = vld [vmem:[#allocation3] sm:$0xff]
      %v206 = vlog2.pop %v205
      %v207 = vmul.f32 %v206, 0.6931472
      %v208 = vadd.f32 %v204, %v207
      %v209 = vld [vmem:[#allocation4] sm:$0xff]
      %v210 = vsub.f32 %v208, %v209
      %v211 = vsub.f32 0.0, %v209
      %v212 = vmax.f32 %v211, 0.0
      %v213 = vadd.f32 %v210, %v212
      %v214 = vmul.f32 %v213, 0.125
      %v215 = vld [vmem:[#allocation5] sm:$0xff]
      %v216 = vmul.f32 %v215, 0.017857144
      %v217 = vadd.f32 %v214, %v216
      %v218 = vmul.f32 %v217, %v203
      %v219 = vsel %vm177, %v218, 0.0
      %220 = vadd.xlane.f32.xlu0 %v219
      %v221 = vpop.xlane.xlu0 %220
      %v222 = vrot.slane %v221, 4
      %v223 = vadd.f32 %v221, %v222
      %v224 = vrot.slane %v223, 2
      %v225 = vadd.f32 %v223, %v224
      %v226 = vrot.slane %v225, 1
      %v227 = vadd.f32 %v225, %v226
      %s228 = vtos %v227
      %s229 = scalar_lea.smem [#allocation11], 0
      %230 = sst [smem:[%s229]] %s228
    $region25: #{tpu_custom_call.1} parent=1 // pred_fallthru
      _
    // Predicated region
    $region26: #{tpu_custom_call.1} parent=1 // pred_check
      _
    $region27: #{tpu_custom_call.1} parent=1 // pred_check_branch
      %232 = sbr.rel (0) target = $region29
    $region28: #{tpu_custom_call.1} parent=1 // pred_region
      %s234 = ssub.s32 16, 16
      %235 = vsyncadd [#allocation8], %s234
      %238 = dma.smem_to_hbm [#allocation11], 16, %s2, [#allocation8]
    $region29: #{tpu_custom_call.1} parent=1 // pred_fallthru
      _
    // Predicated region
    $region30: #{tpu_custom_call.1} parent=1 // pred_check
      _
    $region31: #{tpu_custom_call.1} parent=1 // pred_check_branch
      %240 = sbr.rel (0) target = $region33
    $region32: #{tpu_custom_call.1} parent=1 // pred_region
      %241 = dma.done [#allocation8], 16
    $region33: #{tpu_custom_call.1} parent=1 // pred_fallthru
      _
    %242 = sfence
    %243 = vsyncpa [#allocation7], 1
    %244 = vsyncpa [#allocation10], 1
    %245 = vsyncpa [#allocation8], 1

</llo_original>
